<compile_context>
chip_gen: v6e
topology: v6e:2x2x1
jax: 0.10.0
libtpu: 0.0.40
codegen_flags: <defaults>
</compile_context>

<pallas_src>
import functools

import jax
import jax.numpy as jnp
from jax.experimental import pallas as pl
from jax.experimental.pallas import tpu as pltpu


def _round_up(x, m):
    return (x + m - 1) // m * m


# --------------------------- tiled matmul + bias ------------------------------

def _matmul_bias_kernel(x_ref, w_ref, b_ref, o_ref, acc_ref, *, act_slope):
    @pl.when(pl.program_id(2) == 0)
    def _():
        acc_ref[...] = jnp.zeros_like(acc_ref)

    acc_ref[...] += jnp.dot(x_ref[...], w_ref[...],
                            preferred_element_type=jnp.float32)

    @pl.when(pl.program_id(2) == pl.num_programs(2) - 1)
    def _():
        out = acc_ref[...] + b_ref[...]
        if act_slope is not None:                     # fused LeakyReLU
            out = jnp.where(out >= 0.0, out, out * act_slope)
        o_ref[...] = out.astype(o_ref.dtype)


def matmul_bias(x, w, b, act_slope=None, compute_dtype=jnp.bfloat16,
                out_dtype=jnp.float32):
    """(M,K) @ (K,N) + b[N] with optional fused LeakyReLU.

    bf16 MXU compute with f32 VMEM accumulation by default.  tk == K whenever
    it fits so the x block stays resident across the N tiles (no re-reads);
    N < 128 is padded up so the epilogue stores are lane-dense.
    """
    M, K = x.shape
    N = w.shape[1]
    tm = M if M <= 512 else 512
    tk = K if K <= 1024 else 512
    if N < 128:
        tn = 128                        # lane-dense stores for narrow outputs
    elif N <= 512:
        tn = N
    else:
        tn = 512
    Mp, Kp, Np = _round_up(M, tm), _round_up(K, tk), _round_up(N, tn)

    xq = x if compute_dtype is None else x.astype(compute_dtype)
    wq = w if compute_dtype is None else w.astype(compute_dtype)
    if (Mp, Kp) != (M, K):
        xq = jnp.pad(xq, ((0, Mp - M), (0, Kp - K)))
    if (Kp, Np) != (K, N):
        wq = jnp.pad(wq, ((0, Kp - K), (0, Np - N)))
    bq = b if Np == N else jnp.pad(b, (0, Np - N))

    kernel = functools.partial(_matmul_bias_kernel, act_slope=act_slope)
    out = pl.pallas_call(
        kernel,
        out_shape=jax.ShapeDtypeStruct((Mp, Np), out_dtype),
        grid=(Mp // tm, Np // tn, Kp // tk),
        in_specs=[pl.BlockSpec((tm, tk), lambda i, j, k: (i, k)),
                  pl.BlockSpec((tk, tn), lambda i, j, k: (k, j)),
                  pl.BlockSpec((1, tn), lambda i, j, k: (0, j))],
        out_specs=pl.BlockSpec((tm, tn), lambda i, j, k: (i, j)),
        scratch_shapes=[pltpu.VMEM((tm, tn), jnp.float32)],
        compiler_params=pltpu.CompilerParams(
            dimension_semantics=("parallel", "parallel", "arbitrary")),
    )(xq, wq, bq.reshape(1, Np).astype(jnp.float32))
    if (Mp, Np) != (M, N):
        out = out[:M, :N]
    return out


# ------------------------------ fused Conv1d ----------------------------------

_CONV_VMEM_FALLBACK_BYTES = 10 * 1024 * 1024   # v5e-safe; im2col fallback past this


def _conv1d_kernel(*refs, K, stride, T_out, act_slope):
    # refs = (x_phase_0 .. x_phase_{stride-1}, w, b, out, acc)
    x_refs = refs[:stride]
    w_ref, b_ref, o_ref, acc_ref = refs[stride:]
    acc_ref[...] = jnp.zeros_like(acc_ref)
    for k in range(K):                               # static unroll over taps
        p, off = k % stride, k // stride
        xk = x_refs[p][0, off:off + T_out, :]        # contiguous static view
        acc_ref[...] += jnp.dot(xk, w_ref[k],
                                preferred_element_type=jnp.float32)
    out = acc_ref[...] + b_ref[...]
    if act_slope is not None:                        # fused LeakyReLU
        out = jnp.where(out >= 0.0, out, out * act_slope)
    o_ref[0] = out.astype(o_ref.dtype)


def conv1d_module(x, w, b, stride, act_slope=None, in_scale=None):
    """Mirrors the `Conv` module: pad time by K//2 both sides, conv1d, +LeakyReLU.
    x: (B, T, Cin); w: (Cout, Cin, K) PyTorch layout; returns (B, T_out, Cout).
    `in_scale` (Cin,) folds a per-input-channel diagonal (FBANK normalizer)
    directly into the conv weights."""
    B, T, Cin = x.shape
    Cout, _, K = w.shape
    pad = K // 2
    T_out = (T + 2 * pad - K) // stride + 1
    if in_scale is not None:
        w = w * in_scale[None, :, None]
    w_kco = jnp.transpose(w, (2, 1, 0))              # (K, Cin, Cout)

    xp = jnp.pad(x, ((0, 0), (pad, pad), (0, 0)))
    Tp = T + 2 * pad

    if stride == 1:
        # No phase split needed: padded input used directly (no extra HBM pass).
        L = Tp
        phases = [xp]
    else:
        # Split the padded input into `stride` time-phases so every in-kernel
        # tap read is a contiguous static slice.
        nat = [-(-(Tp - p) // stride) for p in range(stride)]
        L = max([T_out + (K - 1) // stride] + nat)
        phases = []
        for p, n in zip(range(stride), nat):
            ph = xp[:, p::stride, :]
            if n < L:
                ph = jnp.pad(ph, ((0, 0), (0, L - n), (0, 0)))
            phases.append(ph)

    # double-buffered bf16 inputs + bf16 weights + f32 acc + buffered f32 out
    vmem_est = (2 * 2 * stride * L * Cin + 2 * K * Cin * Cout
                + 4 * T_out * Cout * 3)
    if vmem_est > _CONV_VMEM_FALLBACK_BYTES:
        # VMEM-safe fallback for very long sequences: im2col + tiled matmul.
        # TODO(synk): time-tile the fused conv kernel with a halo DMA instead.
        starts = jnp.arange(T_out) * stride
        windows = jnp.stack([xp[:, starts + k, :] for k in range(K)], axis=2)
        cols = windows.reshape(B * T_out, K * Cin)
        out = matmul_bias(cols, w_kco.reshape(K * Cin, Cout), b, act_slope)
        return out.reshape(B, T_out, Cout)

    phases = [p.astype(jnp.bfloat16) for p in phases]
    w_bf = w_kco.astype(jnp.bfloat16)
    kernel = functools.partial(_conv1d_kernel, K=K, stride=stride,
                               T_out=T_out, act_slope=act_slope)
    in_specs = ([pl.BlockSpec((1, L, Cin), lambda bi: (bi, 0, 0))] * stride
                + [pl.BlockSpec((K, Cin, Cout), lambda bi: (0, 0, 0)),
                   pl.BlockSpec((1, Cout), lambda bi: (0, 0))])
    return pl.pallas_call(
        kernel,
        out_shape=jax.ShapeDtypeStruct((B, T_out, Cout), jnp.float32),
        grid=(B,),
        in_specs=in_specs,
        out_specs=pl.BlockSpec((1, T_out, Cout), lambda bi: (bi, 0, 0)),
        scratch_shapes=[pltpu.VMEM((T_out, Cout), jnp.float32)],
        compiler_params=pltpu.CompilerParams(dimension_semantics=("parallel",)),
    )(*phases, w_bf, b.reshape(1, Cout))


# ------------------------- fused bidirectional GRU ----------------------------
#
# Gate pre-activations are precomputed by tiled matmuls (bf16, stored bf16):
#   xg_f[t] = x[t]     @ W_ih_fwd + b_ih_fwd      (columns [r z n], width 3H)
#   xg_b[t] = x[T-1-t] @ W_ih_bwd + b_ih_bwd      (backward stream pre-reversed)
# The recurrence runs as grid=(T,) with the hidden state [h_f | h_b] carried in
# a VMEM scratch; each step does two dense (B,H)@(H,3H) recurrent dots and one
# lane-dense (B,2H) output store.  The backward half is time-flipped in XLA
# afterwards.

def _bigru_step_kernel(xgf_ref, xgb_ref, whh_ref, bhh_ref, o_ref, h_ref, *, H):
    @pl.when(pl.program_id(0) == 0)
    def _():
        h_ref[...] = jnp.zeros_like(h_ref)

    h = h_ref[...]                                       # (B, 2H) f32 carry

    def one_dir(xg_ref, d, h_d):
        xg = xg_ref[0].astype(jnp.float32)               # (B, 3H)
        hh = jnp.dot(h_d.astype(whh_ref.dtype), whh_ref[d],
                     preferred_element_type=jnp.float32) + bhh_ref[d]
        r = jax.nn.sigmoid(xg[:, :H] + hh[:, :H])
        z = jax.nn.sigmoid(xg[:, H:2 * H] + hh[:, H:2 * H])
        n = jnp.tanh(xg[:, 2 * H:] + r * hh[:, 2 * H:])  # b_hn inside r*(...)
        return (1.0 - z) * n + z * h_d

    h_f = one_dir(xgf_ref, 0, h[:, :H])
    h_b = one_dir(xgb_ref, 1, h[:, H:])
    h_new = jnp.concatenate([h_f, h_b], axis=-1)         # (B, 2H)
    h_ref[...] = h_new
    o_ref[0] = h_new.astype(o_ref.dtype)


def bigru(xg_f, xg_b, w_hh, b_hh):
    """xg_f/xg_b: (T, B, 3H) bf16 gate pre-activations (bwd pre-reversed).
    w_hh: (2, H, 3H) bf16; b_hh: (2, 1, 3H) f32.  Returns (T, B, 2H) f32 where
    [:, :, H:] is the backward hidden in *reversed* time order."""
    T, B, G3 = xg_f.shape
    H = G3 // 3
    kernel = functools.partial(_bigru_step_kernel, H=H)
    return pl.pallas_call(
        kernel,
        out_shape=jax.ShapeDtypeStruct((T, B, 2 * H), jnp.float32),
        grid=(T,),
        in_specs=[pl.BlockSpec((1, B, G3), lambda t: (t, 0, 0)),
                  pl.BlockSpec((1, B, G3), lambda t: (t, 0, 0)),
                  pl.BlockSpec((2, H, G3), lambda t: (0, 0, 0)),
                  pl.BlockSpec((2, 1, G3), lambda t: (0, 0, 0))],
        out_specs=pl.BlockSpec((1, B, 2 * H), lambda t: (t, 0, 0)),
        scratch_shapes=[pltpu.VMEM((B, 2 * H), jnp.float32)],
        compiler_params=pltpu.CompilerParams(dimension_semantics=("arbitrary",)),
    )(xg_f, xg_b, w_hh, b_hh)


def gru_layer(x_btc, gru_params):
    """batch_first bidirectional GRU (eval); returns (B, T, 2H)."""
    B, T, Cin = x_btc.shape
    w_ih_f, b_ih_f, w_hh_f, b_hh_f = gru_params["fwd"]
    w_ih_b, b_ih_b, w_hh_b, b_hh_b = gru_params["bwd"]
    H = w_hh_f.shape[1]

    def g3(a):                     # split PyTorch [r; z; n] stacked rows
        return a[0:H], a[H:2 * H], a[2 * H:3 * H]

    # input->gate weights per direction, column layout [r z n] (width 3H)
    rif, zif, nif = g3(w_ih_f)
    rib, zib, nib = g3(w_ih_b)
    Wih_f = jnp.concatenate([rif.T, zif.T, nif.T], axis=1)   # (Cin, 3H)
    Wih_b = jnp.concatenate([rib.T, zib.T, nib.T], axis=1)

    # dense per-direction recurrent weights (H, 3H), stacked as (2, H, 3H)
    rhf, zhf, nhf = g3(w_hh_f)
    rhb, zhb, nhb = g3(w_hh_b)
    Whh = jnp.stack(
        [jnp.concatenate([rhf.T, zhf.T, nhf.T], axis=1),
         jnp.concatenate([rhb.T, zhb.T, nhb.T], axis=1)], axis=0
    ).astype(jnp.bfloat16)
    bhh = jnp.stack([b_hh_f, b_hh_b], axis=0).reshape(2, 1, 3 * H)

    # gate projections: forward uses x[t], backward uses time-reversed x
    x_tb = jnp.transpose(x_btc, (1, 0, 2))                   # (T, B, Cin)
    xf = x_tb.reshape(T * B, Cin)
    xb = x_tb[::-1].reshape(T * B, Cin)                      # flip fused w/ copy
    xg_f = matmul_bias(xf, Wih_f, b_ih_f,
                       out_dtype=jnp.bfloat16).reshape(T, B, 3 * H)
    xg_b = matmul_bias(xb, Wih_b, b_ih_b,
                       out_dtype=jnp.bfloat16).reshape(T, B, 3 * H)

    out = bigru(xg_f, xg_b, Whh, bhh)                        # (T, B, 2H)
    out_f = out[:, :, :H]                                    # fwd, time t
    out_b = out[::-1, :, H:]                                 # bwd, back to time t
    out = jnp.concatenate([out_f, out_b], axis=-1)           # (T, B, 2H)
    return jnp.transpose(out, (1, 0, 2))                     # (B, T, 2H)


# ------------------------------- full encoder ---------------------------------

def encoder_forward(params, fbank_feats, T_durations):
    # FBANK front-end consumes precomputed features (see TODO at top); the
    # learned per-mel-bin normalizer is folded into conv0's weights.
    out = conv1d_module(fbank_feats, params["conv0_w"], params["conv0_b"],
                        stride=2, act_slope=0.125,
                        in_scale=params["fbank_normalizer"])
    for lp in params["enc_layers"]:
        out = gru_layer(out, lp["gru"])          # RNNOutputSelect = output[0]
        # Dropout(p=0.2): identity (eval mode)
        out = conv1d_module(out, lp["conv_w"], lp["conv_b"],
                            stride=1, act_slope=0.125)
    B, T, C = out.shape
    out = matmul_bias(out.reshape(B * T, C), params["lin_w"].T, params["lin_b"])
    return out.reshape(B, T, -1)


def init_params(key, cfg):
    M = cfg["num_mel_bins"]
    H = cfg["num_encoder_hidden"]
    J = cfg["num_joiner_hidden"]
    L = cfg["num_encoder_layers"]
    keys = iter(jax.random.split(key, 128))

    def w(shape, fan_in):
        return jax.random.normal(next(keys), shape, jnp.float32) / jnp.sqrt(float(fan_in))

    params = {}
    params["fbank_normalizer"] = jnp.full((M,), 0.1, jnp.float32)  # Parameter([1/10]*M)
    params["conv0_w"] = w((H, M, 11), M * 11)
    params["conv0_b"] = w((H,), M * 11)
    layers = []
    in_dim = H
    for _ in range(L):
        gru = {}
        for d in ["fwd", "bwd"]:
            gru[d] = (w((3 * H, in_dim), in_dim),   # weight_ih
                      w((3 * H,), H),               # bias_ih
                      w((3 * H, H), H),             # weight_hh
                      w((3 * H,), H))               # bias_hh
        out_dim = 2 * H                             # bidirectional
        layers.append({"gru": gru,
                       "conv_w": w((H, out_dim, 3), out_dim * 3),
                       "conv_b": w((H,), out_dim * 3)})
        in_dim = H
    params["enc_layers"] = layers
    params["lin_w"] = w((J, H), H)
    params["lin_b"] = w((J,), H)
    return params


if __name__ == "__main__":
    cfg = dict(num_mel_bins=8, num_encoder_hidden=32, num_encoder_layers=2,
               num_joiner_hidden=16, bidirectional=True, normalize_fbank=False)
    key = jax.random.PRNGKey(0)
    pkey, xkey = jax.random.split(key)
    params = init_params(pkey, cfg)

    B, frames = 2, 16
    # x: precomputed FBANK features (B, frames, num_mel_bins); T: durations
    x = jax.random.normal(xkey, (B, frames, cfg["num_mel_bins"]), jnp.float32)
    T = jnp.array([frames * 160, frames * 160], jnp.int32)  # unused (normalize_fbank=False)

    out = encoder_forward(params, x, T)
    out = jax.block_until_ready(out)
    # conv0: (16 + 2*5 - 11)//2 + 1 = 8 frames; final Linear -> num_joiner_hidden
    assert out.shape == (B, 8, cfg["num_joiner_hidden"]), out.shape
    assert bool(jnp.all(jnp.isfinite(out))), "non-finite output"
    print("KERNEL_OK")
</pallas_src>

<mosaic_0001>
module attributes {stable_mosaic.version = 11 : i64} {
  func.func @_conv1d_kernel(%arg0: i32, %arg1: memref<1x13x8xbf16, #tpu.memory_space<vmem>>, %arg2: memref<1x13x8xbf16, #tpu.memory_space<vmem>>, %arg3: memref<11x8x32xbf16, #tpu.memory_space<vmem>>, %arg4: memref<1x32xf32, #tpu.memory_space<vmem>>, %arg5: memref<1x8x32xf32, #tpu.memory_space<vmem>>, %arg6: memref<8x32xf32, #tpu.memory_space<vmem>>) attributes {dimension_semantics = [#tpu.dimension_semantics<parallel>], iteration_bounds = array<i64: 2>, scalar_prefetch = 0 : i64, scratch_operands = 1 : i64, tpu.core_type = #tpu.core_type<tc>, window_params = [{transform_indices = @transform_0, window_bounds = array<i64: 1, 13, 8>}, {transform_indices = @transform_1, window_bounds = array<i64: 1, 13, 8>}, {pipeline_mode = #tpu.pipeline_mode<synchronous>, transform_indices = @transform_2, window_bounds = array<i64: 11, 8, 32>}, {pipeline_mode = #tpu.pipeline_mode<synchronous>, transform_indices = @transform_3, window_bounds = array<i64: 1, 32>}, {transform_indices = @transform_4, window_bounds = array<i64: 1, 8, 32>}]} {
    %cst = arith.constant 0.000000e+00 : f32
    %0 = vector.broadcast %cst : f32 to vector<8x32xf32>
    %c0 = arith.constant 0 : index
    %c0_0 = arith.constant 0 : index
    %1 = vector.load %arg6[%c0, %c0_0] : memref<8x32xf32, #tpu.memory_space<vmem>>, vector<8x32xf32>
    tpu.vector_store %arg6[%c0, %c0_0], %0 {strides = array<i32>} : memref<8x32xf32, #tpu.memory_space<vmem>>, vector<8x32xf32>,
    %c0_1 = arith.constant 0 : index
    %c0_2 = arith.constant 0 : index
    %c0_3 = arith.constant 0 : index
    %2 = vector.load %arg1[%c0_1, %c0_2, %c0_3] : memref<1x13x8xbf16, #tpu.memory_space<vmem>>, vector<1x8x8xbf16>
    %3 = vector.shape_cast %2 : vector<1x8x8xbf16> to vector<8x8xbf16>
    %c0_4 = arith.constant 0 : index
    %c0_5 = arith.constant 0 : index
    %4 = vector.load %arg6[%c0_4, %c0_5] : memref<8x32xf32, #tpu.memory_space<vmem>>, vector<8x32xf32>
    %c0_6 = arith.constant 0 : index
    %c0_7 = arith.constant 0 : index
    %c0_8 = arith.constant 0 : index
    %5 = vector.load %arg3[%c0_6, %c0_7, %c0_8] : memref<11x8x32xbf16, #tpu.memory_space<vmem>>, vector<1x8x32xbf16>
    %6 = vector.shape_cast %5 : vector<1x8x32xbf16> to vector<8x32xbf16>
    %cst_9 = arith.constant dense<0.000000e+00> : vector<8x32xf32>
    %7 = tpu.matmul %3, %6, %cst_9 {dimension_numbers = #tpu.dot_dimension_numbers<[1], [0], [0], [1], [0, 0, 1, 1], [], []>} : vector<8x8xbf16>, vector<8x32xbf16>, vector<8x32xf32> -> vector<8x32xf32>
    %8 = arith.addf %4, %7 : vector<8x32xf32>
    %c0_10 = arith.constant 0 : index
    %c0_11 = arith.constant 0 : index
    %9 = vector.load %arg6[%c0_10, %c0_11] : memref<8x32xf32, #tpu.memory_space<vmem>>, vector<8x32xf32>
    tpu.vector_store %arg6[%c0_10, %c0_11], %8 {strides = array<i32>} : memref<8x32xf32, #tpu.memory_space<vmem>>, vector<8x32xf32>,
    %c0_12 = arith.constant 0 : index
    %c0_13 = arith.constant 0 : index
    %c0_14 = arith.constant 0 : index
    %10 = vector.load %arg2[%c0_12, %c0_13, %c0_14] : memref<1x13x8xbf16, #tpu.memory_space<vmem>>, vector<1x8x8xbf16>
    %11 = vector.shape_cast %10 : vector<1x8x8xbf16> to vector<8x8xbf16>
    %c0_15 = arith.constant 0 : index
    %c0_16 = arith.constant 0 : index
    %12 = vector.load %arg6[%c0_15, %c0_16] : memref<8x32xf32, #tpu.memory_space<vmem>>, vector<8x32xf32>
    %c1 = arith.constant 1 : index
    %c0_17 = arith.constant 0 : index
    %c0_18 = arith.constant 0 : index
    %13 = vector.load %arg3[%c1, %c0_17, %c0_18] : memref<11x8x32xbf16, #tpu.memory_space<vmem>>, vector<1x8x32xbf16>
    %14 = vector.shape_cast %13 : vector<1x8x32xbf16> to vector<8x32xbf16>
    %cst_19 = arith.constant dense<0.000000e+00> : vector<8x32xf32>
    %15 = tpu.matmul %11, %14, %cst_19 {dimension_numbers = #tpu.dot_dimension_numbers<[1], [0], [0], [1], [0, 0, 1, 1], [], []>} : vector<8x8xbf16>, vector<8x32xbf16>, vector<8x32xf32> -> vector<8x32xf32>
    %16 = arith.addf %12, %15 : vector<8x32xf32>
    %c0_20 = arith.constant 0 : index
    %c0_21 = arith.constant 0 : index
    %17 = vector.load %arg6[%c0_20, %c0_21] : memref<8x32xf32, #tpu.memory_space<vmem>>, vector<8x32xf32>
    tpu.vector_store %arg6[%c0_20, %c0_21], %16 {strides = array<i32>} : memref<8x32xf32, #tpu.memory_space<vmem>>, vector<8x32xf32>,
    %c0_22 = arith.constant 0 : index
    %c1_23 = arith.constant 1 : index
    %c0_24 = arith.constant 0 : index
    %18 = vector.load %arg1[%c0_22, %c1_23, %c0_24] : memref<1x13x8xbf16, #tpu.memory_space<vmem>>, vector<1x8x8xbf16>
    %19 = vector.shape_cast %18 : vector<1x8x8xbf16> to vector<8x8xbf16>
    %c0_25 = arith.constant 0 : index
    %c0_26 = arith.constant 0 : index
    %20 = vector.load %arg6[%c0_25, %c0_26] : memref<8x32xf32, #tpu.memory_space<vmem>>, vector<8x32xf32>
    %c2 = arith.constant 2 : index
    %c0_27 = arith.constant 0 : index
    %c0_28 = arith.constant 0 : index
    %21 = vector.load %arg3[%c2, %c0_27, %c0_28] : memref<11x8x32xbf16, #tpu.memory_space<vmem>>, vector<1x8x32xbf16>
    %22 = vector.shape_cast %21 : vector<1x8x32xbf16> to vector<8x32xbf16>
    %cst_29 = arith.constant dense<0.000000e+00> : vector<8x32xf32>
    %23 = tpu.matmul %19, %22, %cst_29 {dimension_numbers = #tpu.dot_dimension_numbers<[1], [0], [0], [1], [0, 0, 1, 1], [], []>} : vector<8x8xbf16>, vector<8x32xbf16>, vector<8x32xf32> -> vector<8x32xf32>
    %24 = arith.addf %20, %23 : vector<8x32xf32>
    %c0_30 = arith.constant 0 : index
    %c0_31 = arith.constant 0 : index
    %25 = vector.load %arg6[%c0_30, %c0_31] : memref<8x32xf32, #tpu.memory_space<vmem>>, vector<8x32xf32>
    tpu.vector_store %arg6[%c0_30, %c0_31], %24 {strides = array<i32>} : memref<8x32xf32, #tpu.memory_space<vmem>>, vector<8x32xf32>,
    %c0_32 = arith.constant 0 : index
    %c1_33 = arith.constant 1 : index
    %c0_34 = arith.constant 0 : index
    %26 = vector.load %arg2[%c0_32, %c1_33, %c0_34] : memref<1x13x8xbf16, #tpu.memory_space<vmem>>, vector<1x8x8xbf16>
    %27 = vector.shape_cast %26 : vector<1x8x8xbf16> to vector<8x8xbf16>
    %c0_35 = arith.constant 0 : index
    %c0_36 = arith.constant 0 : index
    %28 = vector.load %arg6[%c0_35, %c0_36] : memref<8x32xf32, #tpu.memory_space<vmem>>, vector<8x32xf32>
    %c3 = arith.constant 3 : index
    %c0_37 = arith.constant 0 : index
    %c0_38 = arith.constant 0 : index
    %29 = vector.load %arg3[%c3, %c0_37, %c0_38] : memref<11x8x32xbf16, #tpu.memory_space<vmem>>, vector<1x8x32xbf16>
    %30 = vector.shape_cast %29 : vector<1x8x32xbf16> to vector<8x32xbf16>
    %cst_39 = arith.constant dense<0.000000e+00> : vector<8x32xf32>
    %31 = tpu.matmul %27, %30, %cst_39 {dimension_numbers = #tpu.dot_dimension_numbers<[1], [0], [0], [1], [0, 0, 1, 1], [], []>} : vector<8x8xbf16>, vector<8x32xbf16>, vector<8x32xf32> -> vector<8x32xf32>
    %32 = arith.addf %28, %31 : vector<8x32xf32>
    %c0_40 = arith.constant 0 : index
    %c0_41 = arith.constant 0 : index
    %33 = vector.load %arg6[%c0_40, %c0_41] : memref<8x32xf32, #tpu.memory_space<vmem>>, vector<8x32xf32>
    tpu.vector_store %arg6[%c0_40, %c0_41], %32 {strides = array<i32>} : memref<8x32xf32, #tpu.memory_space<vmem>>, vector<8x32xf32>,
    %c0_42 = arith.constant 0 : index
    %c2_43 = arith.constant 2 : index
    %c0_44 = arith.constant 0 : index
    %34 = vector.load %arg1[%c0_42, %c2_43, %c0_44] : memref<1x13x8xbf16, #tpu.memory_space<vmem>>, vector<1x8x8xbf16>
    %35 = vector.shape_cast %34 : vector<1x8x8xbf16> to vector<8x8xbf16>
    %c0_45 = arith.constant 0 : index
    %c0_46 = arith.constant 0 : index
    %36 = vector.load %arg6[%c0_45, %c0_46] : memref<8x32xf32, #tpu.memory_space<vmem>>, vector<8x32xf32>
    %c4 = arith.constant 4 : index
    %c0_47 = arith.constant 0 : index
    %c0_48 = arith.constant 0 : index
    %37 = vector.load %arg3[%c4, %c0_47, %c0_48] : memref<11x8x32xbf16, #tpu.memory_space<vmem>>, vector<1x8x32xbf16>
    %38 = vector.shape_cast %37 : vector<1x8x32xbf16> to vector<8x32xbf16>
    %cst_49 = arith.constant dense<0.000000e+00> : vector<8x32xf32>
    %39 = tpu.matmul %35, %38, %cst_49 {dimension_numbers = #tpu.dot_dimension_numbers<[1], [0], [0], [1], [0, 0, 1, 1], [], []>} : vector<8x8xbf16>, vector<8x32xbf16>, vector<8x32xf32> -> vector<8x32xf32>
    %40 = arith.addf %36, %39 : vector<8x32xf32>
    %c0_50 = arith.constant 0 : index
    %c0_51 = arith.constant 0 : index
    %41 = vector.load %arg6[%c0_50, %c0_51] : memref<8x32xf32, #tpu.memory_space<vmem>>, vector<8x32xf32>
    tpu.vector_store %arg6[%c0_50, %c0_51], %40 {strides = array<i32>} : memref<8x32xf32, #tpu.memory_space<vmem>>, vector<8x32xf32>,
    %c0_52 = arith.constant 0 : index
    %c2_53 = arith.constant 2 : index
    %c0_54 = arith.constant 0 : index
    %42 = vector.load %arg2[%c0_52, %c2_53, %c0_54] : memref<1x13x8xbf16, #tpu.memory_space<vmem>>, vector<1x8x8xbf16>
    %43 = vector.shape_cast %42 : vector<1x8x8xbf16> to vector<8x8xbf16>
    %c0_55 = arith.constant 0 : index
    %c0_56 = arith.constant 0 : index
    %44 = vector.load %arg6[%c0_55, %c0_56] : memref<8x32xf32, #tpu.memory_space<vmem>>, vector<8x32xf32>
    %c5 = arith.constant 5 : index
    %c0_57 = arith.constant 0 : index
    %c0_58 = arith.constant 0 : index
    %45 = vector.load %arg3[%c5, %c0_57, %c0_58] : memref<11x8x32xbf16, #tpu.memory_space<vmem>>, vector<1x8x32xbf16>
    %46 = vector.shape_cast %45 : vector<1x8x32xbf16> to vector<8x32xbf16>
    %cst_59 = arith.constant dense<0.000000e+00> : vector<8x32xf32>
    %47 = tpu.matmul %43, %46, %cst_59 {dimension_numbers = #tpu.dot_dimension_numbers<[1], [0], [0], [1], [0, 0, 1, 1], [], []>} : vector<8x8xbf16>, vector<8x32xbf16>, vector<8x32xf32> -> vector<8x32xf32>
    %48 = arith.addf %44, %47 : vector<8x32xf32>
    %c0_60 = arith.constant 0 : index
    %c0_61 = arith.constant 0 : index
    %49 = vector.load %arg6[%c0_60, %c0_61] : memref<8x32xf32, #tpu.memory_space<vmem>>, vector<8x32xf32>
    tpu.vector_store %arg6[%c0_60, %c0_61], %48 {strides = array<i32>} : memref<8x32xf32, #tpu.memory_space<vmem>>, vector<8x32xf32>,
    %c0_62 = arith.constant 0 : index
    %c3_63 = arith.constant 3 : index
    %c0_64 = arith.constant 0 : index
    %50 = vector.load %arg1[%c0_62, %c3_63, %c0_64] : memref<1x13x8xbf16, #tpu.memory_space<vmem>>, vector<1x8x8xbf16>
    %51 = vector.shape_cast %50 : vector<1x8x8xbf16> to vector<8x8xbf16>
    %c0_65 = arith.constant 0 : index
    %c0_66 = arith.constant 0 : index
    %52 = vector.load %arg6[%c0_65, %c0_66] : memref<8x32xf32, #tpu.memory_space<vmem>>, vector<8x32xf32>
    %c6 = arith.constant 6 : index
    %c0_67 = arith.constant 0 : index
    %c0_68 = arith.constant 0 : index
    %53 = vector.load %arg3[%c6, %c0_67, %c0_68] : memref<11x8x32xbf16, #tpu.memory_space<vmem>>, vector<1x8x32xbf16>
    %54 = vector.shape_cast %53 : vector<1x8x32xbf16> to vector<8x32xbf16>
    %cst_69 = arith.constant dense<0.000000e+00> : vector<8x32xf32>
    %55 = tpu.matmul %51, %54, %cst_69 {dimension_numbers = #tpu.dot_dimension_numbers<[1], [0], [0], [1], [0, 0, 1, 1], [], []>} : vector<8x8xbf16>, vector<8x32xbf16>, vector<8x32xf32> -> vector<8x32xf32>
    %56 = arith.addf %52, %55 : vector<8x32xf32>
    %c0_70 = arith.constant 0 : index
    %c0_71 = arith.constant 0 : index
    %57 = vector.load %arg6[%c0_70, %c0_71] : memref<8x32xf32, #tpu.memory_space<vmem>>, vector<8x32xf32>
    tpu.vector_store %arg6[%c0_70, %c0_71], %56 {strides = array<i32>} : memref<8x32xf32, #tpu.memory_space<vmem>>, vector<8x32xf32>,
    %c0_72 = arith.constant 0 : index
    %c3_73 = arith.constant 3 : index
    %c0_74 = arith.constant 0 : index
    %58 = vector.load %arg2[%c0_72, %c3_73, %c0_74] : memref<1x13x8xbf16, #tpu.memory_space<vmem>>, vector<1x8x8xbf16>
    %59 = vector.shape_cast %58 : vector<1x8x8xbf16> to vector<8x8xbf16>
    %c0_75 = arith.constant 0 : index
    %c0_76 = arith.constant 0 : index
    %60 = vector.load %arg6[%c0_75, %c0_76] : memref<8x32xf32, #tpu.memory_space<vmem>>, vector<8x32xf32>
    %c7 = arith.constant 7 : index
    %c0_77 = arith.constant 0 : index
    %c0_78 = arith.constant 0 : index
    %61 = vector.load %arg3[%c7, %c0_77, %c0_78] : memref<11x8x32xbf16, #tpu.memory_space<vmem>>, vector<1x8x32xbf16>
    %62 = vector.shape_cast %61 : vector<1x8x32xbf16> to vector<8x32xbf16>
    %cst_79 = arith.constant dense<0.000000e+00> : vector<8x32xf32>
    %63 = tpu.matmul %59, %62, %cst_79 {dimension_numbers = #tpu.dot_dimension_numbers<[1], [0], [0], [1], [0, 0, 1, 1], [], []>} : vector<8x8xbf16>, vector<8x32xbf16>, vector<8x32xf32> -> vector<8x32xf32>
    %64 = arith.addf %60, %63 : vector<8x32xf32>
    %c0_80 = arith.constant 0 : index
    %c0_81 = arith.constant 0 : index
    %65 = vector.load %arg6[%c0_80, %c0_81] : memref<8x32xf32, #tpu.memory_space<vmem>>, vector<8x32xf32>
    tpu.vector_store %arg6[%c0_80, %c0_81], %64 {strides = array<i32>} : memref<8x32xf32, #tpu.memory_space<vmem>>, vector<8x32xf32>,
    %c0_82 = arith.constant 0 : index
    %c4_83 = arith.constant 4 : index
    %c0_84 = arith.constant 0 : index
    %66 = vector.load %arg1[%c0_82, %c4_83, %c0_84] : memref<1x13x8xbf16, #tpu.memory_space<vmem>>, vector<1x8x8xbf16>
    %67 = vector.shape_cast %66 : vector<1x8x8xbf16> to vector<8x8xbf16>
    %c0_85 = arith.constant 0 : index
    %c0_86 = arith.constant 0 : index
    %68 = vector.load %arg6[%c0_85, %c0_86] : memref<8x32xf32, #tpu.memory_space<vmem>>, vector<8x32xf32>
    %c8 = arith.constant 8 : index
    %c0_87 = arith.constant 0 : index
    %c0_88 = arith.constant 0 : index
    %69 = vector.load %arg3[%c8, %c0_87, %c0_88] : memref<11x8x32xbf16, #tpu.memory_space<vmem>>, vector<1x8x32xbf16>
    %70 = vector.shape_cast %69 : vector<1x8x32xbf16> to vector<8x32xbf16>
    %cst_89 = arith.constant dense<0.000000e+00> : vector<8x32xf32>
    %71 = tpu.matmul %67, %70, %cst_89 {dimension_numbers = #tpu.dot_dimension_numbers<[1], [0], [0], [1], [0, 0, 1, 1], [], []>} : vector<8x8xbf16>, vector<8x32xbf16>, vector<8x32xf32> -> vector<8x32xf32>
    %72 = arith.addf %68, %71 : vector<8x32xf32>
    %c0_90 = arith.constant 0 : index
    %c0_91 = arith.constant 0 : index
    %73 = vector.load %arg6[%c0_90, %c0_91] : memref<8x32xf32, #tpu.memory_space<vmem>>, vector<8x32xf32>
    tpu.vector_store %arg6[%c0_90, %c0_91], %72 {strides = array<i32>} : memref<8x32xf32, #tpu.memory_space<vmem>>, vector<8x32xf32>,
    %c0_92 = arith.constant 0 : index
    %c4_93 = arith.constant 4 : index
    %c0_94 = arith.constant 0 : index
    %74 = vector.load %arg2[%c0_92, %c4_93, %c0_94] : memref<1x13x8xbf16, #tpu.memory_space<vmem>>, vector<1x8x8xbf16>
    %75 = vector.shape_cast %74 : vector<1x8x8xbf16> to vector<8x8xbf16>
    %c0_95 = arith.constant 0 : index
    %c0_96 = arith.constant 0 : index
    %76 = vector.load %arg6[%c0_95, %c0_96] : memref<8x32xf32, #tpu.memory_space<vmem>>, vector<8x32xf32>
    %c9 = arith.constant 9 : index
    %c0_97 = arith.constant 0 : index
    %c0_98 = arith.constant 0 : index
    %77 = vector.load %arg3[%c9, %c0_97, %c0_98] : memref<11x8x32xbf16, #tpu.memory_space<vmem>>, vector<1x8x32xbf16>
    %78 = vector.shape_cast %77 : vector<1x8x32xbf16> to vector<8x32xbf16>
    %cst_99 = arith.constant dense<0.000000e+00> : vector<8x32xf32>
    %79 = tpu.matmul %75, %78, %cst_99 {dimension_numbers = #tpu.dot_dimension_numbers<[1], [0], [0], [1], [0, 0, 1, 1], [], []>} : vector<8x8xbf16>, vector<8x32xbf16>, vector<8x32xf32> -> vector<8x32xf32>
    %80 = arith.addf %76, %79 : vector<8x32xf32>
    %c0_100 = arith.constant 0 : index
    %c0_101 = arith.constant 0 : index
    %81 = vector.load %arg6[%c0_100, %c0_101] : memref<8x32xf32, #tpu.memory_space<vmem>>, vector<8x32xf32>
    tpu.vector_store %arg6[%c0_100, %c0_101], %80 {strides = array<i32>} : memref<8x32xf32, #tpu.memory_space<vmem>>, vector<8x32xf32>,
    %c0_102 = arith.constant 0 : index
    %c5_103 = arith.constant 5 : index
    %c0_104 = arith.constant 0 : index
    %82 = vector.load %arg1[%c0_102, %c5_103, %c0_104] : memref<1x13x8xbf16, #tpu.memory_space<vmem>>, vector<1x8x8xbf16>
    %83 = vector.shape_cast %82 : vector<1x8x8xbf16> to vector<8x8xbf16>
    %c0_105 = arith.constant 0 : index
    %c0_106 = arith.constant 0 : index
    %84 = vector.load %arg6[%c0_105, %c0_106] : memref<8x32xf32, #tpu.memory_space<vmem>>, vector<8x32xf32>
    %c10 = arith.constant 10 : index
    %c0_107 = arith.constant 0 : index
    %c0_108 = arith.constant 0 : index
    %85 = vector.load %arg3[%c10, %c0_107, %c0_108] : memref<11x8x32xbf16, #tpu.memory_space<vmem>>, vector<1x8x32xbf16>
    %86 = vector.shape_cast %85 : vector<1x8x32xbf16> to vector<8x32xbf16>
    %cst_109 = arith.constant dense<0.000000e+00> : vector<8x32xf32>
    %87 = tpu.matmul %83, %86, %cst_109 {dimension_numbers = #tpu.dot_dimension_numbers<[1], [0], [0], [1], [0, 0, 1, 1], [], []>} : vector<8x8xbf16>, vector<8x32xbf16>, vector<8x32xf32> -> vector<8x32xf32>
    %88 = arith.addf %84, %87 : vector<8x32xf32>
    %c0_110 = arith.constant 0 : index
    %c0_111 = arith.constant 0 : index
    %89 = vector.load %arg6[%c0_110, %c0_111] : memref<8x32xf32, #tpu.memory_space<vmem>>, vector<8x32xf32>
    tpu.vector_store %arg6[%c0_110, %c0_111], %88 {strides = array<i32>} : memref<8x32xf32, #tpu.memory_space<vmem>>, vector<8x32xf32>,
    %c0_112 = arith.constant 0 : index
    %c0_113 = arith.constant 0 : index
    %90 = vector.load %arg6[%c0_112, %c0_113] : memref<8x32xf32, #tpu.memory_space<vmem>>, vector<8x32xf32>
    %c0_114 = arith.constant 0 : index
    %c0_115 = arith.constant 0 : index
    %91 = vector.load %arg4[%c0_114, %c0_115] : memref<1x32xf32, #tpu.memory_space<vmem>>, vector<1x32xf32>
    %92 = vector.broadcast %91 : vector<1x32xf32> to vector<8x32xf32>
    %93 = arith.addf %90, %92 : vector<8x32xf32>
    %cst_116 = arith.constant 0.000000e+00 : f32
    %94 = vector.broadcast %cst_116 : f32 to vector<8x32xf32>
    %95 = arith.cmpf oge, %93, %94 : vector<8x32xf32>
    %cst_117 = arith.constant 1.250000e-01 : f32
    %96 = vector.broadcast %cst_117 : f32 to vector<8x32xf32>
    %97 = arith.mulf %93, %96 : vector<8x32xf32>
    %98 = arith.select %95, %93, %97 : vector<8x32xi1>, vector<8x32xf32>
    %c0_118 = arith.constant 0 : index
    %c0_119 = arith.constant 0 : index
    %c0_120 = arith.constant 0 : index
    %99 = vector.load %arg5[%c0_118, %c0_119, %c0_120] : memref<1x8x32xf32, #tpu.memory_space<vmem>>, vector<1x8x32xf32>
    %100 = vector.shape_cast %99 : vector<1x8x32xf32> to vector<8x32xf32>
    %101 = vector.shape_cast %98 : vector<8x32xf32> to vector<1x8x32xf32>
    tpu.vector_store %arg5[%c0_118, %c0_119, %c0_120], %101 {strides = array<i32>} : memref<1x8x32xf32, #tpu.memory_space<vmem>>, vector<1x8x32xf32>,
    return
  }
  func.func @transform_0(%arg0: i32) -> (i32, i32, i32) {
    %c0_i32 = arith.constant 0 : i32
    %c0_i32_0 = arith.constant 0 : i32
    %c0_i32_1 = arith.constant 0 : i32
    return %arg0, %c0_i32, %c0_i32_0 : i32, i32, i32
  }
  func.func @transform_1(%arg0: i32) -> (i32, i32, i32) {
    %c0_i32 = arith.constant 0 : i32
    %c0_i32_0 = arith.constant 0 : i32
    %c0_i32_1 = arith.constant 0 : i32
    return %arg0, %c0_i32, %c0_i32_0 : i32, i32, i32
  }
  func.func @transform_2(%arg0: i32) -> (i32, i32, i32) {
    %c0_i32 = arith.constant 0 : i32
    %c0_i32_0 = arith.constant 0 : i32
    %c0_i32_1 = arith.constant 0 : i32
    %c0_i32_2 = arith.constant 0 : i32
    return %c0_i32, %c0_i32_0, %c0_i32_1 : i32, i32, i32
  }
  func.func @transform_3(%arg0: i32) -> (i32, i32) {
    %c0_i32 = arith.constant 0 : i32
    %c0_i32_0 = arith.constant 0 : i32
    %c0_i32_1 = arith.constant 0 : i32
    return %c0_i32, %c0_i32_0 : i32, i32
  }
  func.func @transform_4(%arg0: i32) -> (i32, i32, i32) {
    %c0_i32 = arith.constant 0 : i32
    %c0_i32_0 = arith.constant 0 : i32
    %c0_i32_1 = arith.constant 0 : i32
    return %arg0, %c0_i32, %c0_i32_0 : i32, i32, i32
  }
}

</mosaic_0001>

<llo_original>
// kernel: tpu_custom_call.1
$region0: #{tpu_custom_call.1}
  #allocation0 [shape = 'u32[]', space=smem, size = 0x4, offset = 0x4, fixed_abs, tag = 'smem constant byte address 0x4 - core index']
  #allocation1 [shape = 'u32[144,128]{1,0:T(1,128)}', space=vmem, size = 0x12000, scoped, tag = 'internal scratch']
  #allocation2 [shape = 'f32[8,32]{1,0:T(8,128)}', space=vmem, size = 0x1000, scoped, tag = 'scratch operand']
  %s0 = inlined_call_operand.vmem [shape: bf16[2,13,8], index: 0, kind: input, shape index: {}]
  %s1 = inlined_call_operand.vmem [shape: bf16[2,13,8], index: 1, kind: input, shape index: {}]
  %s2 = inlined_call_operand.vmem [shape: bf16[11,8,32], index: 2, kind: input, shape index: {}]
  %s3 = inlined_call_operand.vmem [shape: f32[1,32], index: 3, kind: input, shape index: {}]
  %s4 = inlined_call_operand.hbm [shape: f32[2,8,32], index: 4, kind: output, shape index: {}]
  %s5 = sld [smem:[#allocation0]]
  $region49: #{tpu_custom_call.1} parent=0
    _
  %s7 = ssub.s32 1, %s5
  %s8 = scalar_select 0, %s7, %s5
  $region1: #{tpu_custom_call.1} parent=0
    #allocation3 [shape = 'u8[8192]{0}', space=vmem, size = 0x2000, scoped, tag = 'output window, operand 0']
    #allocation4 [shape = 's32[2]{0}', space=sflag, size = 0x8, scoped, tag = 'scoped memory for tpu_custom_call.1']
    %9 = vsyncpa [#allocation4], 0
    %s10 = scalar_lea.sflag [#allocation4], 1
    %11 = vsyncpa %s10, 0
    loop: start=0, step=1, limit=4
    $region2: #{tpu_custom_call.1} parent=1 // loop_pre_header
      _
    $region3: #{tpu_custom_call.1} parent=1 // loop_header
      %s13 = sphi 0, %s17
      %p14 = scmp.ge.s32.totalorder %s13, 4
      %s23 = sphi 0, %s25
      %s26 = sphi 0, %s23
      %s27 = sphi 0, %s26
      %s43 = sphi 0, %s27
      %s49 = sphi 0, %s51
      %s52 = sphi 0, %s49
      %s53 = sphi 0, %s52
      %s69 = sphi 0, %s53
      %s73 = sphi 0, %s73
      %s75 = sphi 0, %s73
      %s76 = sphi 0, %s75
      %s90 = sphi 0, %s76
      %s94 = sphi 0, %s94
      %s96 = sphi 0, %s94
      %s97 = sphi 0, %s96
      %s111 = sphi 0, %s97
      %s117 = sphi 0, %s119
      %s120 = sphi 0, %s117
      %s121 = sphi 0, %s120
      %s137 = sphi 0, %s121
    $region4: #{tpu_custom_call.1} parent=1 // loop_header_branch
      %16 = sbr.rel (%p14) target = $region8
    $region5: #{tpu_custom_call.1} parent=1 // loop_body
      %s18 = ssub.s32 %s13, 1
      %s19 = ssub.s32 %s13, 2
      %s20 = sadd.s32 %s13, 1
      %s21 = ssub.s32 %s13, %s20
      %p22 = scmp.eq.s32.totalorder %s21, 0
      %s24 = sadd.s32 %s23, 1
      %s25 = scalar_select %p22, %s23, %s24
      %p28 = pneg %p22
      %p29 = scmp.eq.s32.totalorder %s13, 1
      %p30 = por %p28, %p29
      %p31 = scmp.ne.s32.totalorder %s23, %s26
      %p32 = scmp.eq.s32.totalorder %s13, 0
      %p33 = por %p31, %p32
      %p34 = scmp.ne.s32.totalorder %s23, %s26
      %p35 = scmp.eq.s32.totalorder %s18, 1
      %p36 = por %p34, %p35
      %p37 = scmp.ne.s32.totalorder %s26, %s27
      %p38 = scmp.eq.s32.totalorder %s18, 0
      %p39 = por %p37, %p38
      %p40 = scmp.ne.s32.totalorder %s26, %s27
      %p41 = scmp.eq.s32.totalorder %s19, 1
      %p42 = por %p40, %p41
      %p44 = scmp.ne.s32.totalorder %s27, %s43
      %p45 = scmp.eq.s32.totalorder %s19, 0
      %p46 = por %p44, %p45
      %s47 = ssub.s32 %s13, %s20
      %p48 = scmp.eq.s32.totalorder %s47, 0
      %s50 = sadd.s32 %s49, 1
      %s51 = scalar_select %p48, %s49, %s50
      %p54 = pneg %p48
      %p55 = scmp.eq.s32.totalorder %s13, 1
      %p56 = por %p54, %p55
      %p57 = scmp.ne.s32.totalorder %s49, %s52
      %p58 = scmp.eq.s32.totalorder %s13, 0
      %p59 = por %p57, %p58
      %p60 = scmp.ne.s32.totalorder %s49, %s52
      %p61 = scmp.eq.s32.totalorder %s18, 1
      %p62 = por %p60, %p61
      %p63 = scmp.ne.s32.totalorder %s52, %s53
      %p64 = scmp.eq.s32.totalorder %s18, 0
      %p65 = por %p63, %p64
      %p66 = scmp.ne.s32.totalorder %s52, %s53
      %p67 = scmp.eq.s32.totalorder %s19, 1
      %p68 = por %p66, %p67
      %p70 = scmp.ne.s32.totalorder %s53, %s69
      %p71 = scmp.eq.s32.totalorder %s19, 0
      %p72 = por %p70, %p71
      %s74 = sadd.s32 %s73, 1
      %p77 = scmp.eq.s32.totalorder %s13, 1
      %p78 = scmp.ne.s32.totalorder %s73, %s75
      %p79 = scmp.eq.s32.totalorder %s13, 0
      %p80 = por %p78, %p79
      %p81 = scmp.ne.s32.totalorder %s73, %s75
      %p82 = scmp.eq.s32.totalorder %s18, 1
      %p83 = por %p81, %p82
      %p84 = scmp.ne.s32.totalorder %s75, %s76
      %p85 = scmp.eq.s32.totalorder %s18, 0
      %p86 = por %p84, %p85
      %p87 = scmp.ne.s32.totalorder %s75, %s76
      %p88 = scmp.eq.s32.totalorder %s19, 1
      %p89 = por %p87, %p88
      %p91 = scmp.ne.s32.totalorder %s76, %s90
      %p92 = scmp.eq.s32.totalorder %s19, 0
      %p93 = por %p91, %p92
      %s95 = sadd.s32 %s94, 1
      %p98 = scmp.eq.s32.totalorder %s13, 1
      %p99 = scmp.ne.s32.totalorder %s94, %s96
      %p100 = scmp.eq.s32.totalorder %s13, 0
      %p101 = por %p99, %p100
      %p102 = scmp.ne.s32.totalorder %s94, %s96
      %p103 = scmp.eq.s32.totalorder %s18, 1
      %p104 = por %p102, %p103
      %p105 = scmp.ne.s32.totalorder %s96, %s97
      %p106 = scmp.eq.s32.totalorder %s18, 0
      %p107 = por %p105, %p106
      %p108 = scmp.ne.s32.totalorder %s96, %s97
      %p109 = scmp.eq.s32.totalorder %s19, 1
      %p110 = por %p108, %p109
      %p112 = scmp.ne.s32.totalorder %s97, %s111
      %p113 = scmp.eq.s32.totalorder %s19, 0
      %p114 = por %p112, %p113
      %s115 = ssub.s32 %s13, %s20
      %p116 = scmp.eq.s32.totalorder %s115, 0
      %s118 = sadd.s32 %s117, 1
      %s119 = scalar_select %p116, %s117, %s118
      %p122 = pneg %p116
      %p123 = scmp.eq.s32.totalorder %s13, 1
      %p124 = por %p122, %p123
      %p125 = scmp.ne.s32.totalorder %s117, %s120
      %p126 = scmp.eq.s32.totalorder %s13, 0
      %p127 = por %p125, %p126
      %p128 = scmp.ne.s32.totalorder %s117, %s120
      %p129 = scmp.eq.s32.totalorder %s18, 1
      %p130 = por %p128, %p129
      %p131 = scmp.ne.s32.totalorder %s120, %s121
      %p132 = scmp.eq.s32.totalorder %s18, 0
      %p133 = por %p131, %p132
      %p134 = scmp.ne.s32.totalorder %s120, %s121
      %p135 = scmp.eq.s32.totalorder %s19, 1
      %p136 = por %p134, %p135
      %p138 = scmp.ne.s32.totalorder %s121, %s137
      %p139 = scmp.eq.s32.totalorder %s19, 0
      %p140 = por %p138, %p139
      %p141 = scmp.le.s32.totalorder 1, %s13
      %p142 = scmp.lt.s32.totalorder %s13, 3
      %p143 = pnand %p141, %p142
      %p144 = pneg %p143
      // Predicated region
      $region9: #{tpu_custom_call.1} parent=5 // pred_check
        _
      $region10: #{tpu_custom_call.1} parent=5 // pred_check_branch
        %146 = sbr.rel (%p143) target = $region12
      $region11: #{tpu_custom_call.1} parent=5 // pred_region
        %s147 = ssub.s32 %s13, 1
        // Predicated region
        $region13: #{tpu_custom_call.1} parent=11 // pred_check
          %p148 = pneg %p86
        $region14: #{tpu_custom_call.1} parent=11 // pred_check_branch
          %150 = sbr.rel (%p148) target = $region16
        $region15: #{tpu_custom_call.1} parent=11 // pred_region
          _
        $region16: #{tpu_custom_call.1} parent=11 // pred_fallthru
          _
        // Predicated region
        $region17: #{tpu_custom_call.1} parent=11 // pred_check
          %p151 = pneg %p107
        $region18: #{tpu_custom_call.1} parent=11 // pred_check_branch
          %153 = sbr.rel (%p151) target = $region20
        $region19: #{tpu_custom_call.1} parent=11 // pred_region
          _
        $region20: #{tpu_custom_call.1} parent=11 // pred_fallthru
          _
      $region12: #{tpu_custom_call.1} parent=5 // pred_fallthru
        _
      %p154 = scmp.lt.s32.totalorder %s13, 2
      // Predicated region
      $region21: #{tpu_custom_call.1} parent=5 // pred_check
        %p155 = pneg %p154
      $region22: #{tpu_custom_call.1} parent=5 // pred_check_branch
        %157 = sbr.rel (%p155) target = $region24
      $region23: #{tpu_custom_call.1} parent=5 // pred_region
        // Predicated region
        $region25: #{tpu_custom_call.1} parent=23 // pred_check
          %p158 = pneg %p33
        $region26: #{tpu_custom_call.1} parent=23 // pred_check_branch
          %160 = sbr.rel (%p158) target = $region28
        $region27: #{tpu_custom_call.1} parent=23 // pred_region
          %p161 = scmp.lt.s32.totalorder %s13, 1
          %s162 = scalar_select %p161, %s13, 1
          %s163 = smul.addr %s162, 2
          %s164 = smul.addr %s163, 4
          %s165 = scalar_lea.vmem %s0, %s164
        $region28: #{tpu_custom_call.1} parent=23 // pred_fallthru
          _
        // Predicated region
        $region29: #{tpu_custom_call.1} parent=23 // pred_check
          %p166 = pneg %p59
        $region30: #{tpu_custom_call.1} parent=23 // pred_check_branch
          %168 = sbr.rel (%p166) target = $region32
        $region31: #{tpu_custom_call.1} parent=23 // pred_region
          %p169 = scmp.lt.s32.totalorder %s13, 1
          %s170 = scalar_select %p169, %s13, 1
          %s171 = smul.addr %s170, 2
          %s172 = smul.addr %s171, 4
          %s173 = scalar_lea.vmem %s1, %s172
        $region32: #{tpu_custom_call.1} parent=23 // pred_fallthru
          _
      $region24: #{tpu_custom_call.1} parent=5 // pred_fallthru
        _
      %p174 = scmp.le.s32.totalorder 1, %s13
      %p175 = scmp.lt.s32.totalorder %s13, 3
      %p176 = pnand %p174, %p175
      %p177 = pneg %p176
      // Predicated region
      $region33: #{tpu_custom_call.1} parent=5 // pred_check
        _
      $region34: #{tpu_custom_call.1} parent=5 // pred_check_branch
        %179 = sbr.rel (%p176) target = $region36
      $region35: #{tpu_custom_call.1} parent=5 // pred_region
        %s180 = ssub.s32 %s13, 1
        %p181 = scmp.lt.s32.totalorder %s18, 1
        %s182 = scalar_select %p181, %s18, 1
        %s183 = smul.addr %s182, 2
        %s184 = smul.addr %s183, 4
        %s185 = scalar_lea.vmem %s0, %s184
        %p186 = pneg %p39
        %p187 = pneg %p36
        %p188 = scmp.lt.s32.totalorder %s18, 1
        %s189 = scalar_select %p188, %s18, 1
        %s190 = smul.addr %s189, 2
        %s191 = smul.addr %s190, 4
        %s192 = scalar_lea.vmem %s1, %s191
        %p193 = pneg %p65
        %p194 = pneg %p62
        %p195 = pneg %p86
        %p196 = pneg %p83
        %p197 = pneg %p107
        %p198 = pneg %p104
        %p199 = pneg %p133
        %p200 = pneg %p130
        %s201 = sand.u32 %s120, 1
        %s202 = scalar_lea.sflag [#allocation4], %s201
        %s203 = sand.u32 %s120, 1
        %s204 = smul.addr %s203, 8
        %s205 = scalar_lea.vmem [#allocation3], %s204
        %p206 = scmp.lt.s32.totalorder %s18, 1
        %s207 = scalar_select %p206, %s18, 1
        %s208 = smul.addr %s207, 2
        %s209 = smul.addr %s208, 4
        %s210 = scalar_lea.vmem %s0, %s209
        %p211 = scmp.lt.s32.totalorder %s18, 1
        %s212 = scalar_select %p211, %s18, 1
        %s213 = smul.addr %s212, 2
        %s214 = smul.addr %s213, 4
        %s215 = scalar_lea.vmem %s1, %s214
        %vm217 = vcmask 261120
        %218 = vst.msk [vmem:[#allocation2] sm:$0xff] %vm217, 0.0
        %v219 = vld [vmem:[%s210] sm:$0xf]
        %v220 = vld [vmem:[#allocation2] sm:$0xff]
        %v221 = vld [vmem:[%s2] sm:$0xf]
        %vm222 = vcmask 64512
        %v224 = vsel %vm222, %v219, 0
        %vm226 = vcmask 1043456
        %v228 = vsel %vm226, %v221, 0
        %230 = vmatprep.subr.bf16.mxu0 0
        %231 = vmatpush1.bf16.msra.mxu0 0
        %232 = vmatprep.subr.bf16.mxu0 0
        %233 = vmatpush1.bf16.msra.mxu0 0
        %234 = vmatprep.subr.bf16.mxu0 0
        %235 = vmatpush1.bf16.msra.mxu0 0
        %236 = vmatprep.subr.bf16.mxu0 0
        %237 = vmatpush1.bf16.msra.mxu0 0
        %238 = vmatprep.subr.bf16.mxu0 0
        %239 = vmatpush1.bf16.msra.mxu0 0
        %240 = vmatprep.subr.bf16.mxu0 0
        %241 = vmatpush1.bf16.msra.mxu0 0
        %242 = vmatprep.subr.bf16.mxu0 0
        %243 = vmatpush1.bf16.msra.mxu0 0
        %244 = vmatprep.subr.bf16.mxu0 0
        %245 = vmatpush1.bf16.msra.mxu0 %v228
        %246 = vmatprep.subr.bf16.mxu0 0
        %247 = vmatpush2.bf16.msra.mxu0 0
        %248 = vmatprep.subr.bf16.mxu0 0
        %249 = vmatpush2.bf16.msra.mxu0 0
        %250 = vmatprep.subr.bf16.mxu0 0
        %251 = vmatpush2.bf16.msra.mxu0 0
        %252 = vmatprep.subr.bf16.mxu0 0
        %253 = vmatpush2.bf16.msra.mxu0 0
        %254 = vmatprep.subr.bf16.mxu0 0
        %255 = vmatpush2.bf16.msra.mxu0 0
        %256 = vmatprep.subr.bf16.mxu0 0
        %257 = vmatpush2.bf16.msra.mxu0 0
        %258 = vmatprep.subr.bf16.mxu0 0
        %259 = vmatpush2.bf16.msra.mxu0 0
        %260 = vmatprep.subr.bf16.mxu0 0
        %261 = vmatpush2.bf16.msra.mxu0 0
        %262 = vmatprep.mubr.bf16.mxu0 0
        %263 = vmatmul.mubr.bf16.gmra.mxu0 %v224
        %v264 = vpop.f32.mrf.mxu0
        %v265 = vadd.f32 0.0, %v264
        %v266 = vpop.f32.mrf.mxu0
        %v267 = vpop.f32.mrf.mxu0
        %v268 = vpop.f32.mrf.mxu0
        %269 = vdwg.mxu0
        %v270 = vadd.f32 %v220, %v265
        %271 = vst.msk [vmem:[#allocation2] sm:$0xff] %vm217, %v270
        %v272 = vld [vmem:[%s215] sm:$0xf]
        %v273 = vld [vmem:[#allocation2] sm:$0xff]
        %s274 = scalar_lea.vmem %s2, 4
        %v275 = vld [vmem:[%s274] sm:$0xf]
        %v277 = vsel %vm222, %v272, 0
        %v280 = vsel %vm226, %v275, 0
        %282 = vmatprep.subr.bf16.mxu0 0
        %283 = vmatpush1.bf16.msra.mxu0 0
        %284 = vmatprep.subr.bf16.mxu0 0
        %285 = vmatpush1.bf16.msra.mxu0 0
        %286 = vmatprep.subr.bf16.mxu0 0
        %287 = vmatpush1.bf16.msra.mxu0 0
        %288 = vmatprep.subr.bf16.mxu0 0
        %289 = vmatpush1.bf16.msra.mxu0 0
        %290 = vmatprep.subr.bf16.mxu0 0
        %291 = vmatpush1.bf16.msra.mxu0 0
        %292 = vmatprep.subr.bf16.mxu0 0
        %293 = vmatpush1.bf16.msra.mxu0 0
        %294 = vmatprep.subr.bf16.mxu0 0
        %295 = vmatpush1.bf16.msra.mxu0 0
        %296 = vmatprep.subr.bf16.mxu0 0
        %297 = vmatpush1.bf16.msra.mxu0 %v280
        %298 = vmatprep.subr.bf16.mxu0 0
        %299 = vmatpush2.bf16.msra.mxu0 0
        %300 = vmatprep.subr.bf16.mxu0 0
        %301 = vmatpush2.bf16.msra.mxu0 0
        %302 = vmatprep.subr.bf16.mxu0 0
        %303 = vmatpush2.bf16.msra.mxu0 0
        %304 = vmatprep.subr.bf16.mxu0 0
        %305 = vmatpush2.bf16.msra.mxu0 0
        %306 = vmatprep.subr.bf16.mxu0 0
        %307 = vmatpush2.bf16.msra.mxu0 0
        %308 = vmatprep.subr.bf16.mxu0 0
        %309 = vmatpush2.bf16.msra.mxu0 0
        %310 = vmatprep.subr.bf16.mxu0 0
        %311 = vmatpush2.bf16.msra.mxu0 0
        %312 = vmatprep.subr.bf16.mxu0 0
        %313 = vmatpush2.bf16.msra.mxu0 0
        %314 = vmatprep.mubr.bf16.mxu0 0
        %315 = vmatmul.mubr.bf16.gmra.mxu0 %v277
        %v316 = vpop.f32.mrf.mxu0
        %v317 = vadd.f32 0.0, %v316
        %v318 = vpop.f32.mrf.mxu0
        %v319 = vpop.f32.mrf.mxu0
        %v320 = vpop.f32.mrf.mxu0
        %321 = vdwg.mxu0
        %v322 = vadd.f32 %v273, %v317
        %323 = vst.msk [vmem:[#allocation2] sm:$0xff] %vm217, %v322
        %v324 = vld [vmem:[%s210] sm:$0xf]
        %v325 = vld [vmem:[%s210 + $0x4] sm:$0x1]
        %v326 = vld [vmem:[#allocation2] sm:$0xff]
        %s327 = scalar_lea.vmem %s2, 8
        %v328 = vld [vmem:[%s327] sm:$0xf]
        %v331 = vunpack.c.l.b16 %v324
        %v332 = vunpack.c.l.b16 %v325
        %v333 = vpack.c.b16 %v332, %v331
        %v335 = vshrl.u32 %v333, 16
        %v337 = vshll.u32 %v333, 16
        %v339 = vrot.slane %v337, 1
        %v340 = vor.u32 %v335, %v339
        %v342 = vsel %vm222, %v340, 0
        %v345 = vsel %vm226, %v328, 0
        %347 = vmatprep.subr.bf16.mxu0 0
        %348 = vmatpush1.bf16.msra.mxu0 0
        %349 = vmatprep.subr.bf16.mxu0 0
        %350 = vmatpush1.bf16.msra.mxu0 0
        %351 = vmatprep.subr.bf16.mxu0 0
        %352 = vmatpush1.bf16.msra.mxu0 0
        %353 = vmatprep.subr.bf16.mxu0 0
        %354 = vmatpush1.bf16.msra.mxu0 0
        %355 = vmatprep.subr.bf16.mxu0 0
        %356 = vmatpush1.bf16.msra.mxu0 0
        %357 = vmatprep.subr.bf16.mxu0 0
        %358 = vmatpush1.bf16.msra.mxu0 0
        %359 = vmatprep.subr.bf16.mxu0 0
        %360 = vmatpush1.bf16.msra.mxu0 0
        %361 = vmatprep.subr.bf16.mxu0 0
        %362 = vmatpush1.bf16.msra.mxu0 %v345
        %363 = vmatprep.subr.bf16.mxu0 0
        %364 = vmatpush2.bf16.msra.mxu0 0
        %365 = vmatprep.subr.bf16.mxu0 0
        %366 = vmatpush2.bf16.msra.mxu0 0
        %367 = vmatprep.subr.bf16.mxu0 0
        %368 = vmatpush2.bf16.msra.mxu0 0
        %369 = vmatprep.subr.bf16.mxu0 0
        %370 = vmatpush2.bf16.msra.mxu0 0
        %371 = vmatprep.subr.bf16.mxu0 0
        %372 = vmatpush2.bf16.msra.mxu0 0
        %373 = vmatprep.subr.bf16.mxu0 0
        %374 = vmatpush2.bf16.msra.mxu0 0
        %375 = vmatprep.subr.bf16.mxu0 0
        %376 = vmatpush2.bf16.msra.mxu0 0
        %377 = vmatprep.subr.bf16.mxu0 0
        %378 = vmatpush2.bf16.msra.mxu0 0
        %379 = vmatprep.mubr.bf16.mxu0 0
        %380 = vmatmul.mubr.bf16.gmra.mxu0 %v342
        %v381 = vpop.f32.mrf.mxu0
        %v382 = vadd.f32 0.0, %v381
        %v383 = vpop.f32.mrf.mxu0
        %v384 = vpop.f32.mrf.mxu0
        %v385 = vpop.f32.mrf.mxu0
        %386 = vdwg.mxu0
        %v387 = vadd.f32 %v326, %v382
        %388 = vst.msk [vmem:[#allocation2] sm:$0xff] %vm217, %v387
        %v389 = vld [vmem:[%s215] sm:$0xf]
        %v390 = vld [vmem:[%s215 + $0x4] sm:$0x1]
        %v391 = vld [vmem:[#allocation2] sm:$0xff]
        %s392 = scalar_lea.vmem %s2, 12
        %v393 = vld [vmem:[%s392] sm:$0xf]
        %v396 = vunpack.c.l.b16 %v389
        %v397 = vunpack.c.l.b16 %v390
        %v398 = vpack.c.b16 %v397, %v396
        %v400 = vshrl.u32 %v398, 16
        %v402 = vshll.u32 %v398, 16
        %v404 = vrot.slane %v402, 1
        %v405 = vor.u32 %v400, %v404
        %v407 = vsel %vm222, %v405, 0
        %v410 = vsel %vm226, %v393, 0
        %412 = vmatprep.subr.bf16.mxu0 0
        %413 = vmatpush1.bf16.msra.mxu0 0
        %414 = vmatprep.subr.bf16.mxu0 0
        %415 = vmatpush1.bf16.msra.mxu0 0
        %416 = vmatprep.subr.bf16.mxu0 0
        %417 = vmatpush1.bf16.msra.mxu0 0
        %418 = vmatprep.subr.bf16.mxu0 0
        %419 = vmatpush1.bf16.msra.mxu0 0
        %420 = vmatprep.subr.bf16.mxu0 0
        %421 = vmatpush1.bf16.msra.mxu0 0
        %422 = vmatprep.subr.bf16.mxu0 0
        %423 = vmatpush1.bf16.msra.mxu0 0
        %424 = vmatprep.subr.bf16.mxu0 0
        %425 = vmatpush1.bf16.msra.mxu0 0
        %426 = vmatprep.subr.bf16.mxu0 0
        %427 = vmatpush1.bf16.msra.mxu0 %v410
        %428 = vmatprep.subr.bf16.mxu0 0
        %429 = vmatpush2.bf16.msra.mxu0 0
        %430 = vmatprep.subr.bf16.mxu0 0
        %431 = vmatpush2.bf16.msra.mxu0 0
        %432 = vmatprep.subr.bf16.mxu0 0
        %433 = vmatpush2.bf16.msra.mxu0 0
        %434 = vmatprep.subr.bf16.mxu0 0
        %435 = vmatpush2.bf16.msra.mxu0 0
        %436 = vmatprep.subr.bf16.mxu0 0
        %437 = vmatpush2.bf16.msra.mxu0 0
        %438 = vmatprep.subr.bf16.mxu0 0
        %439 = vmatpush2.bf16.msra.mxu0 0
        %440 = vmatprep.subr.bf16.mxu0 0
        %441 = vmatpush2.bf16.msra.mxu0 0
        %442 = vmatprep.subr.bf16.mxu0 0
        %443 = vmatpush2.bf16.msra.mxu0 0
        %444 = vmatprep.mubr.bf16.mxu0 0
        %445 = vmatmul.mubr.bf16.gmra.mxu0 %v407
        %v446 = vpop.f32.mrf.mxu0
        %v447 = vadd.f32 0.0, %v446
        %v448 = vpop.f32.mrf.mxu0
        %v449 = vpop.f32.mrf.mxu0
        %v450 = vpop.f32.mrf.mxu0
        %451 = vdwg.mxu0
        %v452 = vadd.f32 %v391, %v447
        %453 = vst.msk [vmem:[#allocation2] sm:$0xff] %vm217, %v452
        %v454 = vld [vmem:[%s210] sm:$0xe]
        %v455 = vld [vmem:[%s210 + $0x4] sm:$0x1]
        %v456 = vld [vmem:[#allocation2] sm:$0xff]
        %s457 = scalar_lea.vmem %s2, 16
        %v458 = vld [vmem:[%s457] sm:$0xf]
        %v461 = vunpack.c.l.b16 %v454
        %v462 = vunpack.c.l.b16 %v455
        %v463 = vpack.c.b16 %v462, %v461
        %v464 = vrot.slane %v463, 1
        %v466 = vsel %vm222, %v464, 0
        %v469 = vsel %vm226, %v458, 0
        %471 = vmatprep.subr.bf16.mxu0 0
        %472 = vmatpush1.bf16.msra.mxu0 0
        %473 = vmatprep.subr.bf16.mxu0 0
        %474 = vmatpush1.bf16.msra.mxu0 0
        %475 = vmatprep.subr.bf16.mxu0 0
        %476 = vmatpush1.bf16.msra.mxu0 0
        %477 = vmatprep.subr.bf16.mxu0 0
        %478 = vmatpush1.bf16.msra.mxu0 0
        %479 = vmatprep.subr.bf16.mxu0 0
        %480 = vmatpush1.bf16.msra.mxu0 0
        %481 = vmatprep.subr.bf16.mxu0 0
        %482 = vmatpush1.bf16.msra.mxu0 0
        %483 = vmatprep.subr.bf16.mxu0 0
        %484 = vmatpush1.bf16.msra.mxu0 0
        %485 = vmatprep.subr.bf16.mxu0 0
        %486 = vmatpush1.bf16.msra.mxu0 %v469
        %487 = vmatprep.subr.bf16.mxu0 0
        %488 = vmatpush2.bf16.msra.mxu0 0
        %489 = vmatprep.subr.bf16.mxu0 0
        %490 = vmatpush2.bf16.msra.mxu0 0
        %491 = vmatprep.subr.bf16.mxu0 0
        %492 = vmatpush2.bf16.msra.mxu0 0
        %493 = vmatprep.subr.bf16.mxu0 0
        %494 = vmatpush2.bf16.msra.mxu0 0
        %495 = vmatprep.subr.bf16.mxu0 0
        %496 = vmatpush2.bf16.msra.mxu0 0
        %497 = vmatprep.subr.bf16.mxu0 0
        %498 = vmatpush2.bf16.msra.mxu0 0
        %499 = vmatprep.subr.bf16.mxu0 0
        %500 = vmatpush2.bf16.msra.mxu0 0
        %501 = vmatprep.subr.bf16.mxu0 0
        %502 = vmatpush2.bf16.msra.mxu0 0
        %503 = vmatprep.mubr.bf16.mxu0 0
        %504 = vmatmul.mubr.bf16.gmra.mxu0 %v466
        %v505 = vpop.f32.mrf.mxu0
        %v506 = vadd.f32 0.0, %v505
        %v507 = vpop.f32.mrf.mxu0
        %v508 = vpop.f32.mrf.mxu0
        %v509 = vpop.f32.mrf.mxu0
        %510 = vdwg.mxu0
        %v511 = vadd.f32 %v456, %v506
        %512 = vst.msk [vmem:[#allocation2] sm:$0xff] %vm217, %v511
        %v513 = vld [vmem:[%s215] sm:$0xe]
        %v514 = vld [vmem:[%s215 + $0x4] sm:$0x1]
        %v515 = vld [vmem:[#allocation2] sm:$0xff]
        %s516 = scalar_lea.vmem %s2, 20
        %v517 = vld [vmem:[%s516] sm:$0xf]
        %v520 = vunpack.c.l.b16 %v513
        %v521 = vunpack.c.l.b16 %v514
        %v522 = vpack.c.b16 %v521, %v520
        %v523 = vrot.slane %v522, 1
        %v525 = vsel %vm222, %v523, 0
        %v528 = vsel %vm226, %v517, 0
        %530 = vmatprep.subr.bf16.mxu0 0
        %531 = vmatpush1.bf16.msra.mxu0 0
        %532 = vmatprep.subr.bf16.mxu0 0
        %533 = vmatpush1.bf16.msra.mxu0 0
        %534 = vmatprep.subr.bf16.mxu0 0
        %535 = vmatpush1.bf16.msra.mxu0 0
        %536 = vmatprep.subr.bf16.mxu0 0
        %537 = vmatpush1.bf16.msra.mxu0 0
        %538 = vmatprep.subr.bf16.mxu0 0
        %539 = vmatpush1.bf16.msra.mxu0 0
        %540 = vmatprep.subr.bf16.mxu0 0
        %541 = vmatpush1.bf16.msra.mxu0 0
        %542 = vmatprep.subr.bf16.mxu0 0
        %543 = vmatpush1.bf16.msra.mxu0 0
        %544 = vmatprep.subr.bf16.mxu0 0
        %545 = vmatpush1.bf16.msra.mxu0 %v528
        %546 = vmatprep.subr.bf16.mxu0 0
        %547 = vmatpush2.bf16.msra.mxu0 0
        %548 = vmatprep.subr.bf16.mxu0 0
        %549 = vmatpush2.bf16.msra.mxu0 0
        %550 = vmatprep.subr.bf16.mxu0 0
        %551 = vmatpush2.bf16.msra.mxu0 0
        %552 = vmatprep.subr.bf16.mxu0 0
        %553 = vmatpush2.bf16.msra.mxu0 0
        %554 = vmatprep.subr.bf16.mxu0 0
        %555 = vmatpush2.bf16.msra.mxu0 0
        %556 = vmatprep.subr.bf16.mxu0 0
        %557 = vmatpush2.bf16.msra.mxu0 0
        %558 = vmatprep.subr.bf16.mxu0 0
        %559 = vmatpush2.bf16.msra.mxu0 0
        %560 = vmatprep.subr.bf16.mxu0 0
        %561 = vmatpush2.bf16.msra.mxu0 0
        %562 = vmatprep.mubr.bf16.mxu0 0
        %563 = vmatmul.mubr.bf16.gmra.mxu0 %v525
        %v564 = vpop.f32.mrf.mxu0
        %v565 = vadd.f32 0.0, %v564
        %v566 = vpop.f32.mrf.mxu0
        %v567 = vpop.f32.mrf.mxu0
        %v568 = vpop.f32.mrf.mxu0
        %569 = vdwg.mxu0
        %v570 = vadd.f32 %v515, %v565
        %571 = vst.msk [vmem:[#allocation2] sm:$0xff] %vm217, %v570
        %v572 = vld [vmem:[%s210] sm:$0xe]
        %v573 = vld [vmem:[%s210 + $0x4] sm:$0x3]
        %v574 = vld [vmem:[#allocation2] sm:$0xff]
        %s575 = scalar_lea.vmem %s2, 24
        %v576 = vld [vmem:[%s575] sm:$0xf]
        %v579 = vunpack.c.l.b16 %v572
        %v580 = vunpack.c.l.b16 %v573
        %v581 = vpack.c.b16 %v580, %v579
        %v583 = vshrl.u32 %v581, 16
        %v585 = vrot.slane %v583, 1
        %v586 = vshll.u32 %v581, 16
        %v588 = vrot.slane %v586, 2
        %v589 = vor.u32 %v585, %v588
        %v591 = vsel %vm222, %v589, 0
        %v594 = vsel %vm226, %v576, 0
        %596 = vmatprep.subr.bf16.mxu0 0
        %597 = vmatpush1.bf16.msra.mxu0 0
        %598 = vmatprep.subr.bf16.mxu0 0
        %599 = vmatpush1.bf16.msra.mxu0 0
        %600 = vmatprep.subr.bf16.mxu0 0
        %601 = vmatpush1.bf16.msra.mxu0 0
        %602 = vmatprep.subr.bf16.mxu0 0
        %603 = vmatpush1.bf16.msra.mxu0 0
        %604 = vmatprep.subr.bf16.mxu0 0
        %605 = vmatpush1.bf16.msra.mxu0 0
        %606 = vmatprep.subr.bf16.mxu0 0
        %607 = vmatpush1.bf16.msra.mxu0 0
        %608 = vmatprep.subr.bf16.mxu0 0
        %609 = vmatpush1.bf16.msra.mxu0 0
        %610 = vmatprep.subr.bf16.mxu0 0
        %611 = vmatpush1.bf16.msra.mxu0 %v594
        %612 = vmatprep.subr.bf16.mxu0 0
        %613 = vmatpush2.bf16.msra.mxu0 0
        %614 = vmatprep.subr.bf16.mxu0 0
        %615 = vmatpush2.bf16.msra.mxu0 0
        %616 = vmatprep.subr.bf16.mxu0 0
        %617 = vmatpush2.bf16.msra.mxu0 0
        %618 = vmatprep.subr.bf16.mxu0 0
        %619 = vmatpush2.bf16.msra.mxu0 0
        %620 = vmatprep.subr.bf16.mxu0 0
        %621 = vmatpush2.bf16.msra.mxu0 0
        %622 = vmatprep.subr.bf16.mxu0 0
        %623 = vmatpush2.bf16.msra.mxu0 0
        %624 = vmatprep.subr.bf16.mxu0 0
        %625 = vmatpush2.bf16.msra.mxu0 0
        %626 = vmatprep.subr.bf16.mxu0 0
        %627 = vmatpush2.bf16.msra.mxu0 0
        %628 = vmatprep.mubr.bf16.mxu0 0
        %629 = vmatmul.mubr.bf16.gmra.mxu0 %v591
        %v630 = vpop.f32.mrf.mxu0
        %v631 = vadd.f32 0.0, %v630
        %v632 = vpop.f32.mrf.mxu0
        %v633 = vpop.f32.mrf.mxu0
        %v634 = vpop.f32.mrf.mxu0
        %635 = vdwg.mxu0
        %v636 = vadd.f32 %v574, %v631
        %637 = vst.msk [vmem:[#allocation2] sm:$0xff] %vm217, %v636
        %v638 = vld [vmem:[%s215] sm:$0xe]
        %v639 = vld [vmem:[%s215 + $0x4] sm:$0x3]
        %v640 = vld [vmem:[#allocation2] sm:$0xff]
        %s641 = scalar_lea.vmem %s2, 28
        %v642 = vld [vmem:[%s641] sm:$0xf]
        %v645 = vunpack.c.l.b16 %v638
        %v646 = vunpack.c.l.b16 %v639
        %v647 = vpack.c.b16 %v646, %v645
        %v649 = vshrl.u32 %v647, 16
        %v651 = vrot.slane %v649, 1
        %v652 = vshll.u32 %v647, 16
        %v654 = vrot.slane %v652, 2
        %v655 = vor.u32 %v651, %v654
        %v657 = vsel %vm222, %v655, 0
        %v660 = vsel %vm226, %v642, 0
        %662 = vmatprep.subr.bf16.mxu0 0
        %663 = vmatpush1.bf16.msra.mxu0 0
        %664 = vmatprep.subr.bf16.mxu0 0
        %665 = vmatpush1.bf16.msra.mxu0 0
        %666 = vmatprep.subr.bf16.mxu0 0
        %667 = vmatpush1.bf16.msra.mxu0 0
        %668 = vmatprep.subr.bf16.mxu0 0
        %669 = vmatpush1.bf16.msra.mxu0 0
        %670 = vmatprep.subr.bf16.mxu0 0
        %671 = vmatpush1.bf16.msra.mxu0 0
        %672 = vmatprep.subr.bf16.mxu0 0
        %673 = vmatpush1.bf16.msra.mxu0 0
        %674 = vmatprep.subr.bf16.mxu0 0
        %675 = vmatpush1.bf16.msra.mxu0 0
        %676 = vmatprep.subr.bf16.mxu0 0
        %677 = vmatpush1.bf16.msra.mxu0 %v660
        %678 = vmatprep.subr.bf16.mxu0 0
        %679 = vmatpush2.bf16.msra.mxu0 0
        %680 = vmatprep.subr.bf16.mxu0 0
        %681 = vmatpush2.bf16.msra.mxu0 0
        %682 = vmatprep.subr.bf16.mxu0 0
        %683 = vmatpush2.bf16.msra.mxu0 0
        %684 = vmatprep.subr.bf16.mxu0 0
        %685 = vmatpush2.bf16.msra.mxu0 0
        %686 = vmatprep.subr.bf16.mxu0 0
        %687 = vmatpush2.bf16.msra.mxu0 0
        %688 = vmatprep.subr.bf16.mxu0 0
        %689 = vmatpush2.bf16.msra.mxu0 0
        %690 = vmatprep.subr.bf16.mxu0 0
        %691 = vmatpush2.bf16.msra.mxu0 0
        %692 = vmatprep.subr.bf16.mxu0 0
        %693 = vmatpush2.bf16.msra.mxu0 0
        %694 = vmatprep.mubr.bf16.mxu0 0
        %695 = vmatmul.mubr.bf16.gmra.mxu0 %v657
        %v696 = vpop.f32.mrf.mxu0
        %v697 = vadd.f32 0.0, %v696
        %v698 = vpop.f32.mrf.mxu0
        %v699 = vpop.f32.mrf.mxu0
        %v700 = vpop.f32.mrf.mxu0
        %701 = vdwg.mxu0
        %v702 = vadd.f32 %v640, %v697
        %703 = vst.msk [vmem:[#allocation2] sm:$0xff] %vm217, %v702
        %v704 = vld [vmem:[%s210] sm:$0xc]
        %v705 = vld [vmem:[%s210 + $0x4] sm:$0x3]
        %v706 = vld [vmem:[#allocation2] sm:$0xff]
        %s707 = scalar_lea.vmem %s2, 32
        %v708 = vld [vmem:[%s707] sm:$0xf]
        %v711 = vunpack.c.l.b16 %v704
        %v712 = vunpack.c.l.b16 %v705
        %v713 = vpack.c.b16 %v712, %v711
        %v714 = vrot.slane %v713, 2
        %v716 = vsel %vm222, %v714, 0
        %v719 = vsel %vm226, %v708, 0
        %721 = vmatprep.subr.bf16.mxu0 0
        %722 = vmatpush1.bf16.msra.mxu0 0
        %723 = vmatprep.subr.bf16.mxu0 0
        %724 = vmatpush1.bf16.msra.mxu0 0
        %725 = vmatprep.subr.bf16.mxu0 0
        %726 = vmatpush1.bf16.msra.mxu0 0
        %727 = vmatprep.subr.bf16.mxu0 0
        %728 = vmatpush1.bf16.msra.mxu0 0
        %729 = vmatprep.subr.bf16.mxu0 0
        %730 = vmatpush1.bf16.msra.mxu0 0
        %731 = vmatprep.subr.bf16.mxu0 0
        %732 = vmatpush1.bf16.msra.mxu0 0
        %733 = vmatprep.subr.bf16.mxu0 0
        %734 = vmatpush1.bf16.msra.mxu0 0
        %735 = vmatprep.subr.bf16.mxu0 0
        %736 = vmatpush1.bf16.msra.mxu0 %v719
        %737 = vmatprep.subr.bf16.mxu0 0
        %738 = vmatpush2.bf16.msra.mxu0 0
        %739 = vmatprep.subr.bf16.mxu0 0
        %740 = vmatpush2.bf16.msra.mxu0 0
        %741 = vmatprep.subr.bf16.mxu0 0
        %742 = vmatpush2.bf16.msra.mxu0 0
        %743 = vmatprep.subr.bf16.mxu0 0
        %744 = vmatpush2.bf16.msra.mxu0 0
        %745 = vmatprep.subr.bf16.mxu0 0
        %746 = vmatpush2.bf16.msra.mxu0 0
        %747 = vmatprep.subr.bf16.mxu0 0
        %748 = vmatpush2.bf16.msra.mxu0 0
        %749 = vmatprep.subr.bf16.mxu0 0
        %750 = vmatpush2.bf16.msra.mxu0 0
        %751 = vmatprep.subr.bf16.mxu0 0
        %752 = vmatpush2.bf16.msra.mxu0 0
        %753 = vmatprep.mubr.bf16.mxu0 0
        %754 = vmatmul.mubr.bf16.gmra.mxu0 %v716
        %v755 = vpop.f32.mrf.mxu0
        %v756 = vadd.f32 0.0, %v755
        %v757 = vpop.f32.mrf.mxu0
        %v758 = vpop.f32.mrf.mxu0
        %v759 = vpop.f32.mrf.mxu0
        %760 = vdwg.mxu0
        %v761 = vadd.f32 %v706, %v756
        %762 = vst.msk [vmem:[#allocation2] sm:$0xff] %vm217, %v761
        %v763 = vld [vmem:[%s215] sm:$0xc]
        %v764 = vld [vmem:[%s215 + $0x4] sm:$0x3]
        %v765 = vld [vmem:[#allocation2] sm:$0xff]
        %s766 = scalar_lea.vmem %s2, 36
        %v767 = vld [vmem:[%s766] sm:$0xf]
        %v770 = vunpack.c.l.b16 %v763
        %v771 = vunpack.c.l.b16 %v764
        %v772 = vpack.c.b16 %v771, %v770
        %v773 = vrot.slane %v772, 2
        %v775 = vsel %vm222, %v773, 0
        %v778 = vsel %vm226, %v767, 0
        %780 = vmatprep.subr.bf16.mxu0 0
        %781 = vmatpush1.bf16.msra.mxu0 0
        %782 = vmatprep.subr.bf16.mxu0 0
        %783 = vmatpush1.bf16.msra.mxu0 0
        %784 = vmatprep.subr.bf16.mxu0 0
        %785 = vmatpush1.bf16.msra.mxu0 0
        %786 = vmatprep.subr.bf16.mxu0 0
        %787 = vmatpush1.bf16.msra.mxu0 0
        %788 = vmatprep.subr.bf16.mxu0 0
        %789 = vmatpush1.bf16.msra.mxu0 0
        %790 = vmatprep.subr.bf16.mxu0 0
        %791 = vmatpush1.bf16.msra.mxu0 0
        %792 = vmatprep.subr.bf16.mxu0 0
        %793 = vmatpush1.bf16.msra.mxu0 0
        %794 = vmatprep.subr.bf16.mxu0 0
        %795 = vmatpush1.bf16.msra.mxu0 %v778
        %796 = vmatprep.subr.bf16.mxu0 0
        %797 = vmatpush2.bf16.msra.mxu0 0
        %798 = vmatprep.subr.bf16.mxu0 0
        %799 = vmatpush2.bf16.msra.mxu0 0
        %800 = vmatprep.subr.bf16.mxu0 0
        %801 = vmatpush2.bf16.msra.mxu0 0
        %802 = vmatprep.subr.bf16.mxu0 0
        %803 = vmatpush2.bf16.msra.mxu0 0
        %804 = vmatprep.subr.bf16.mxu0 0
        %805 = vmatpush2.bf16.msra.mxu0 0
        %806 = vmatprep.subr.bf16.mxu0 0
        %807 = vmatpush2.bf16.msra.mxu0 0
        %808 = vmatprep.subr.bf16.mxu0 0
        %809 = vmatpush2.bf16.msra.mxu0 0
        %810 = vmatprep.subr.bf16.mxu0 0
        %811 = vmatpush2.bf16.msra.mxu0 0
        %812 = vmatprep.mubr.bf16.mxu0 0
        %813 = vmatmul.mubr.bf16.gmra.mxu0 %v775
        %v814 = vpop.f32.mrf.mxu0
        %v815 = vadd.f32 0.0, %v814
        %v816 = vpop.f32.mrf.mxu0
        %v817 = vpop.f32.mrf.mxu0
        %v818 = vpop.f32.mrf.mxu0
        %819 = vdwg.mxu0
        %v820 = vadd.f32 %v765, %v815
        %821 = vst.msk [vmem:[#allocation2] sm:$0xff] %vm217, %v820
        %v822 = vld [vmem:[%s210] sm:$0xc]
        %v823 = vld [vmem:[%s210 + $0x4] sm:$0x7]
        %v824 = vld [vmem:[#allocation2] sm:$0xff]
        %s825 = scalar_lea.vmem %s2, 40
        %v826 = vld [vmem:[%s825] sm:$0xf]
        %v829 = vunpack.c.l.b16 %v822
        %v830 = vunpack.c.l.b16 %v823
        %v831 = vpack.c.b16 %v830, %v829
        %v833 = vshrl.u32 %v831, 16
        %v835 = vrot.slane %v833, 2
        %v836 = vshll.u32 %v831, 16
        %v838 = vrot.slane %v836, 3
        %v839 = vor.u32 %v835, %v838
        %v841 = vsel %vm222, %v839, 0
        %v844 = vsel %vm226, %v826, 0
        %846 = vmatprep.subr.bf16.mxu0 0
        %847 = vmatpush1.bf16.msra.mxu0 0
        %848 = vmatprep.subr.bf16.mxu0 0
        %849 = vmatpush1.bf16.msra.mxu0 0
        %850 = vmatprep.subr.bf16.mxu0 0
        %851 = vmatpush1.bf16.msra.mxu0 0
        %852 = vmatprep.subr.bf16.mxu0 0
        %853 = vmatpush1.bf16.msra.mxu0 0
        %854 = vmatprep.subr.bf16.mxu0 0
        %855 = vmatpush1.bf16.msra.mxu0 0
        %856 = vmatprep.subr.bf16.mxu0 0
        %857 = vmatpush1.bf16.msra.mxu0 0
        %858 = vmatprep.subr.bf16.mxu0 0
        %859 = vmatpush1.bf16.msra.mxu0 0
        %860 = vmatprep.subr.bf16.mxu0 0
        %861 = vmatpush1.bf16.msra.mxu0 %v844
        %862 = vmatprep.subr.bf16.mxu0 0
        %863 = vmatpush2.bf16.msra.mxu0 0
        %864 = vmatprep.subr.bf16.mxu0 0
        %865 = vmatpush2.bf16.msra.mxu0 0
        %866 = vmatprep.subr.bf16.mxu0 0
        %867 = vmatpush2.bf16.msra.mxu0 0
        %868 = vmatprep.subr.bf16.mxu0 0
        %869 = vmatpush2.bf16.msra.mxu0 0
        %870 = vmatprep.subr.bf16.mxu0 0
        %871 = vmatpush2.bf16.msra.mxu0 0
        %872 = vmatprep.subr.bf16.mxu0 0
        %873 = vmatpush2.bf16.msra.mxu0 0
        %874 = vmatprep.subr.bf16.mxu0 0
        %875 = vmatpush2.bf16.msra.mxu0 0
        %876 = vmatprep.subr.bf16.mxu0 0
        %877 = vmatpush2.bf16.msra.mxu0 0
        %878 = vmatprep.mubr.bf16.mxu0 0
        %879 = vmatmul.mubr.bf16.gmra.mxu0 %v841
        %v880 = vpop.f32.mrf.mxu0
        %v881 = vadd.f32 0.0, %v880
        %v882 = vpop.f32.mrf.mxu0
        %v883 = vpop.f32.mrf.mxu0
        %v884 = vpop.f32.mrf.mxu0
        %885 = vdwg.mxu0
        %v886 = vadd.f32 %v824, %v881
        %887 = vst.msk [vmem:[#allocation2] sm:$0xff] %vm217, %v886
        %v888 = vld [vmem:[#allocation2] sm:$0xff]
        %v889 = vld [vmem:[%s3] sm:$0x1]
        %v891 = vlaneseq
        %v892 = vshrl.u32 %v891, 7
        %v893 = vsub.s32 0, %v892
        %v894 = vrot.slane %v889, %v893
        %v896 = vadd.f32 %v888, %v894
        %vm897 = vcmp.ge.f32.partialorder %v896, 0.0
        %v898 = vmul.f32 %v896, 0.125
        %v899 = vsel %vm897, %v896, %v898
        %900 = vst.msk [vmem:[%s205] sm:$0xff] %vm217, %v899
        %s901 = sand.u32 %s120, 1
        %s902 = scalar_lea.sflag [#allocation4], %s901
        %s903 = sand.u32 %s120, 1
        %s904 = smul.addr %s903, 8
        %s905 = scalar_lea.vmem [#allocation3], %s904
        // Predicated region
        $region37: #{tpu_custom_call.1} parent=35 // pred_check
          %p906 = pneg %p130
        $region38: #{tpu_custom_call.1} parent=35 // pred_check_branch
          %908 = sbr.rel (%p906) target = $region40
        $region39: #{tpu_custom_call.1} parent=35 // pred_region
          %s910 = ssub.s32 128, 128
          %911 = vsyncadd %s902, %s910
          %s912 = smul.addr %s18, 128
          %s913 = scalar_lea.hbm %s4, %s912
          %s915 = sshll.u32 %s905, 4
          %s916 = int_to_ptr.vmem [resolvable:$true] %s915
          %918 = dma.vmem_to_hbm [thread:$0]  %s916, 128, %s913, %s902
        $region40: #{tpu_custom_call.1} parent=35 // pred_fallthru
          _
      $region36: #{tpu_custom_call.1} parent=5 // pred_fallthru
        _
      %p919 = scmp.le.s32.totalorder 2, %s13
      // Predicated region
      $region41: #{tpu_custom_call.1} parent=5 // pred_check
        %p920 = pneg %p919
      $region42: #{tpu_custom_call.1} parent=5 // pred_check_branch
        %922 = sbr.rel (%p920) target = $region44
      $region43: #{tpu_custom_call.1} parent=5 // pred_region
        %s923 = ssub.s32 %s13, 2
        // Predicated region
        $region45: #{tpu_custom_call.1} parent=43 // pred_check
          %p924 = pneg %p136
        $region46: #{tpu_custom_call.1} parent=43 // pred_check_branch
          %926 = sbr.rel (%p924) target = $region48
        $region47: #{tpu_custom_call.1} parent=43 // pred_region
          %s927 = sand.u32 %s121, 1
          %s928 = scalar_lea.sflag [#allocation4], %s927
          %s929 = sand.u32 %s121, 1
          %s930 = smul.addr %s929, 8
          %s931 = scalar_lea.vmem [#allocation3], %s930
          %932 = dma.done %s928, 128
        $region48: #{tpu_custom_call.1} parent=43 // pred_fallthru
          _
      $region44: #{tpu_custom_call.1} parent=5 // pred_fallthru
        _
    $region6: #{tpu_custom_call.1} parent=1 // loop_footer
      %s17 = sadd.s32 1, %s13
    $region7: #{tpu_custom_call.1} parent=1 // loop_footer_branch
      %12 = sbr.rel target = $region3
    $region8: #{tpu_custom_call.1} parent=1 // loop_exit
      _
    %933 = vsyncpa [#allocation4], 1
    %s934 = scalar_lea.sflag [#allocation4], 1
    %935 = vsyncpa %s934, 1

</llo_original>
